<compile_context>
chip_gen: v5e
topology: v5e:2x2
jax: 0.10.0
libtpu: 0.0.40
codegen_flags: <defaults>
</compile_context>

<pallas_src>
import functools

import jax
import jax.numpy as jnp
import numpy as np
from jax.experimental import pallas as pl
from jax.experimental.pallas import tpu as pltpu

# Deterministic stand-in for NodeType.Mask.value (enum not provided).
MASK_NODE_TYPE = 1


def _round_up(x, m):
    return ((x + m - 1) // m) * m


# ---------------------------------------------------------------------------
# mask_frac < 1 path: BFS loop never entered; only the root stays unmasked.
# One grid step over a sublane-dense (r_pad, n_pad) slab covering every
# (graph, feature-column) row.  Zero adjacency traffic.
# ---------------------------------------------------------------------------
def _nobfs_kernel(roots_ref, fill_ref, feats_ref, out_ref):
    r_pad, n_pad = out_ref.shape
    lane = jax.lax.broadcasted_iota(jnp.int32, (r_pad, n_pad), 1)
    node_mask = lane != roots_ref[...]                      # (r_pad,1) broadcast
    fill = jnp.broadcast_to(fill_ref[...], (r_pad, n_pad))
    out_ref[...] = jnp.where(node_mask, fill, feats_ref[...])


# ---------------------------------------------------------------------------
# mask_frac >= 1 path: mask every node NOT reachable from root.
# Reachability via ceil(log2(max_n-1)) full-width bf16 matrix squarings on the
# MXU (exact: 0/1 values, f32 accumulation), then a one-hot MXU row pick.
# ---------------------------------------------------------------------------
def _mask_rows(node_mask, feats01, n_pad, mask_value, mask_idx):
    """feats01: (2, n_pad) int32, node_mask: (1, n_pad) bool (True -> mask)."""
    fill = jnp.where(
        jax.lax.broadcasted_iota(jnp.int32, (2, n_pad), 0) == 0,
        jnp.int32(mask_value), jnp.int32(mask_idx))
    return jnp.where(jnp.broadcast_to(node_mask, (2, n_pad)), fill, feats01)


def _bfs_kernel(roots_ref, feats01_ref, adj_ref, out_ref, *,
                n_pad, n_doublings, unroll, mask_value, mask_idx):
    b = pl.program_id(0)
    root = roots_ref[b]

    # adj is 0/1 bf16 with self-loops, so reach after k squarings covers all
    # paths of length <= 2^k.
    reach = adj_ref[0]                                      # (n_pad, n_pad) bf16

    def square(_, r):
        acc = jnp.dot(r, r, preferred_element_type=jnp.float32)   # MXU, f32 acc
        return (acc > 0.0).astype(jnp.bfloat16)                   # saturate 0/1

    reach = jax.lax.fori_loop(0, n_doublings, square, reach, unroll=unroll)

    # visited = reach[root, :] via a one-hot MXU row pick (no sublane gather).
    lane_ids = jax.lax.broadcasted_iota(jnp.int32, (1, n_pad), 1)
    onehot = (lane_ids == root).astype(jnp.bfloat16)               # (1, n_pad)
    visited = jnp.dot(onehot, reach, preferred_element_type=jnp.float32)
    node_mask = visited == 0.0                                     # True -> mask
    out_ref[0, :, :] = _mask_rows(node_mask, feats01_ref[0], n_pad,
                                  mask_value, mask_idx)
    # TODO(synk): for n_pad where the reach + f32-acc working set exceeds VMEM
    # (esp. v7x 64 MiB), keep the adjacency in HBM (pl.ANY) and square in
    # (n_pad, ~512) column panels with pltpu.emit_pipeline.
    # TODO(synk): generation-specific adjacency dtype (int8 on v5e/v6e, fp8 on
    # v7x) ~2x the MXU rate on the dominant N^3 term; bf16 kept as the
    # everywhere-correct default here.
    # TODO(synk): for small-diameter graphs a frontier sweep
    # v <- saturate(v @ A) with a fixed-point early exit drops the cost to
    # d * 2N^2 and removes the N^2 f32 accumulator.


def subtree_masker_forward(graphs, *, mask_frac=0.25, mask_idx=0, seed=0):
    """graphs: list of (node_features (N, F) jnp array, adjacency (N, N)).

    Returns list of (new_node_features, adjacency, root); root is the
    deterministic host-side stand-in for random.randint in the reference."""
    B = len(graphs)
    ns = [int(nf.shape[0]) for nf, _ in graphs]
    max_n = max(ns)
    n_pad = _round_up(max_n, 128)

    # One host copy of each graph's node features, reused for padding and for
    # the final scatter-back (no eager device-side at[].set() chains anywhere).
    nfs_np = [np.asarray(nf) for nf, _ in graphs]

    # Host-side root draw (the module uses Python random.randint).
    rng = np.random.default_rng(seed)
    roots_np = np.array([int(rng.integers(0, n)) for n in ns], dtype=np.int32)

    # Reference while-loop entry condition (node_mask.sum() == N-1 at entry):
    # (N-1) < int(N*mask_frac)  <=>  mask_frac >= 1, independent of N.
    do_bfs_flags = [(n - 1) < int(n * mask_frac) for n in ns]
    assert all(f == do_bfs_flags[0] for f in do_bfs_flags)
    do_bfs = do_bfs_flags[0]

    if do_bfs:
        # Padded feature cols 0/1 (node index on the 128-lane axis) and the
        # 0/1 bf16 adjacency with self-loops, assembled once in NumPy.
        feats01_np = np.zeros((B, 2, n_pad), np.int32)
        adj_np = np.zeros((B, n_pad, n_pad), np.float32)
        for b, (_, adj) in enumerate(graphs):
            n = ns[b]
            feats01_np[b, :, :n] = nfs_np[b][:, :2].T
            a = (np.asarray(adj) != 0) | np.eye(n, dtype=bool)
            adj_np[b, :n, :n] = a
        feats01 = jnp.asarray(feats01_np)
        adj_b = jnp.asarray(adj_np.astype(jnp.bfloat16))
        roots = jnp.asarray(roots_np)

        # 2^k >= longest possible shortest path (max_n - 1), NOT n_pad - 1.
        n_doublings, reach_len = 0, 1
        while reach_len < max_n - 1:
            reach_len *= 2
            n_doublings += 1
        # Serial-dependent matmuls: unrolling long chains only bloats the
        # program and vreg pressure.
        unroll = n_doublings <= 4

        # Single-buffer the adjacency once its double-buffer starts to eat
        # VMEM; the step is compute-bound (log2(N)*2N^3 flops vs 2N^2 DMA
        # bytes) so the lost overlap is small.
        adj_buffers = 1 if n_pad >= 2048 else 2

        # Working set ~ adj buffers (2B each) + reach (2B) + f32 acc (4B).
        vmem_bytes = (2 * adj_buffers + 8) * n_pad * n_pad + (4 << 20)
        vmem_bytes = int(max(32 << 20, min(vmem_bytes, 100 << 20)))

        kernel = functools.partial(
            _bfs_kernel, n_pad=n_pad, n_doublings=n_doublings, unroll=unroll,
            mask_value=MASK_NODE_TYPE, mask_idx=mask_idx)
        cost = pl.CostEstimate(
            flops=B * (n_doublings * 2 * n_pad ** 3 + 2 * n_pad ** 2),
            transcendentals=0,
            bytes_accessed=B * (2 * n_pad * n_pad + 2 * 2 * 2 * n_pad * 4 + 4))
        out_dev = pl.pallas_call(
            kernel,
            grid_spec=pltpu.PrefetchScalarGridSpec(
                num_scalar_prefetch=1,
                grid=(B,),
                in_specs=[
                    pl.BlockSpec((1, 2, n_pad), lambda b, roots: (b, 0, 0)),
                    pl.BlockSpec((1, n_pad, n_pad), lambda b, roots: (b, 0, 0),
                                 pipeline_mode=pl.Buffered(adj_buffers)),
                ],
                out_specs=pl.BlockSpec((1, 2, n_pad),
                                       lambda b, roots: (b, 0, 0))),
            out_shape=jax.ShapeDtypeStruct((B, 2, n_pad), jnp.int32),
            compiler_params=pltpu.CompilerParams(
                dimension_semantics=("parallel",),
                vmem_limit_bytes=vmem_bytes),
            cost_estimate=cost,
        )(roots, feats01, adj_b)
    else:
        # Flatten (graph, feature-column) onto the sublane axis; pad rows to a
        # multiple of 8 so stores are sublane-dense.  Single grid step.
        r = 2 * B
        r_pad = _round_up(max(r, 8), 8)
        feats_rows = np.zeros((r_pad, n_pad), np.int32)
        roots_rows = np.full((r_pad, 1), -1, np.int32)   # pad rows: all masked
        fill_rows = np.zeros((r_pad, 1), np.int32)
        for b in range(B):
            n = ns[b]
            feats_rows[2 * b, :n] = nfs_np[b][:, 0]
            feats_rows[2 * b + 1, :n] = nfs_np[b][:, 1]
            roots_rows[2 * b:2 * b + 2, 0] = roots_np[b]
            fill_rows[2 * b, 0] = MASK_NODE_TYPE
            fill_rows[2 * b + 1, 0] = mask_idx

        cost = pl.CostEstimate(
            flops=2 * r_pad * n_pad, transcendentals=0,
            bytes_accessed=2 * r_pad * n_pad * 4 + 2 * r_pad * 4)
        out_dev = pl.pallas_call(
            _nobfs_kernel,
            grid=(1,),
            in_specs=[pl.BlockSpec((r_pad, 1), lambda i: (0, 0)),
                      pl.BlockSpec((r_pad, 1), lambda i: (0, 0)),
                      pl.BlockSpec((r_pad, n_pad), lambda i: (0, 0))],
            out_specs=pl.BlockSpec((r_pad, n_pad), lambda i: (0, 0)),
            out_shape=jax.ShapeDtypeStruct((r_pad, n_pad), jnp.int32),
            compiler_params=pltpu.CompilerParams(
                dimension_semantics=("arbitrary",)),
            cost_estimate=cost,
        )(jnp.asarray(roots_rows), jnp.asarray(fill_rows),
          jnp.asarray(feats_rows))

    # Single D2H pull, then per-graph host scatter of columns 0/1.  Note: if
    # node features are floats with non-integer values in cols 0/1 they would
    # be truncated by the int32 kernel path (they are categorical ints here).
    out_host = np.asarray(jax.device_get(out_dev))
    augments = []
    for b, (nf, adj) in enumerate(graphs):
        n = ns[b]
        new_nf = nfs_np[b].copy()
        if do_bfs:
            new_nf[:, 0] = out_host[b, 0, :n]
            new_nf[:, 1] = out_host[b, 1, :n]
        else:
            new_nf[:, 0] = out_host[2 * b, :n]
            new_nf[:, 1] = out_host[2 * b + 1, :n]
        augments.append((jnp.asarray(new_nf, dtype=nf.dtype), adj,
                         int(roots_np[b])))
    return augments


def _reference_numpy(node_features, adj, root, mask_frac, mask_idx):
    """Direct transcription of the PyTorch forward for one graph."""
    nf = np.array(node_features).copy()
    adj = np.array(adj)
    n = nf.shape[0]
    cap = int(n * mask_frac)
    node_mask = np.ones(n, dtype=bool)
    node_mask[root] = False
    queue, seen = [root], set()
    while node_mask.sum() < cap and queue:
        node = queue.pop(0)
        seen.add(node)
        for nb in np.nonzero(adj[node])[0]:
            nb = int(nb)
            if nb not in seen:
                queue.append(nb)
                node_mask[nb] = False
    nf[:, 0][node_mask] = MASK_NODE_TYPE
    nf[:, 1][node_mask] = mask_idx
    return nf


if __name__ == "__main__":
    key = jax.random.PRNGKey(0)
    B, N, F = 2, 16, 8   # 2 graphs, 16 nodes each, 8 node features

    graphs = []
    for b in range(B):
        kf, ka = jax.random.split(jax.random.fold_in(key, 100 + b))
        nf = jax.random.randint(kf, (N, F), 2, 10, dtype=jnp.int32)
        a = (jax.random.uniform(ka, (N, N)) < 0.2).astype(jnp.int32)
        adj = jnp.maximum(a, a.T)                       # symmetric 0/1 adjacency
        adj = adj * (1 - jnp.eye(N, dtype=jnp.int32))   # no self loops
        graphs.append((nf, adj))

    ok = True
    # Default mask_frac=0.25 (BFS loop never entered) and mask_frac=1.0
    # (full reachability path, exercises the MXU log-doubling).
    for frac in (0.25, 1.0):
        outs = subtree_masker_forward(graphs, mask_frac=frac, mask_idx=0)
        for (new_nf, adj, root), (nf, _) in zip(outs, graphs):
            new_nf = jax.block_until_ready(new_nf)
            ref = _reference_numpy(nf, adj, root, frac, 0)
            if not np.array_equal(np.array(new_nf), ref):
                ok = False

    if ok:
        print("KERNEL_OK")
    else:
        print("MISMATCH")
</pallas_src>

<mosaic_0001>
module attributes {stable_mosaic.version = 11 : i64} {
  func.func @_nobfs_kernel(%arg0: i32, %arg1: memref<8x1xi32, #tpu.memory_space<vmem>>, %arg2: memref<8x1xi32, #tpu.memory_space<vmem>>, %arg3: memref<8x128xi32, #tpu.memory_space<vmem>>, %arg4: memref<8x128xi32, #tpu.memory_space<vmem>>) attributes {dimension_semantics = [#tpu.dimension_semantics<arbitrary>], iteration_bounds = array<i64: 1>, scalar_prefetch = 0 : i64, scratch_operands = 0 : i64, tpu.core_type = #tpu.core_type<tc>, window_params = [{pipeline_mode = #tpu.pipeline_mode<synchronous>, transform_indices = @transform_0, window_bounds = array<i64: 8, 1>}, {pipeline_mode = #tpu.pipeline_mode<synchronous>, transform_indices = @transform_1, window_bounds = array<i64: 8, 1>}, {pipeline_mode = #tpu.pipeline_mode<synchronous>, transform_indices = @transform_2, window_bounds = array<i64: 8, 128>}, {pipeline_mode = #tpu.pipeline_mode<synchronous>, transform_indices = @transform_3, window_bounds = array<i64: 8, 128>}]} {
    %0 = tpu.iota {dimensions = array<i32: 1>} : vector<8x128xi32>
    %c0 = arith.constant 0 : index
    %c0_0 = arith.constant 0 : index
    %1 = vector.load %arg1[%c0, %c0_0] : memref<8x1xi32, #tpu.memory_space<vmem>>, vector<8x1xi32>
    %2 = vector.broadcast %1 : vector<8x1xi32> to vector<8x128xi32>
    %3 = arith.cmpi ne, %0, %2 : vector<8x128xi32>
    %c0_1 = arith.constant 0 : index
    %c0_2 = arith.constant 0 : index
    %4 = vector.load %arg2[%c0_1, %c0_2] : memref<8x1xi32, #tpu.memory_space<vmem>>, vector<8x1xi32>
    %5 = vector.shape_cast %4 : vector<8x1xi32> to vector<8x1xi32>
    %6 = vector.broadcast %5 : vector<8x1xi32> to vector<8x128xi32>
    %c0_3 = arith.constant 0 : index
    %c0_4 = arith.constant 0 : index
    %7 = vector.load %arg3[%c0_3, %c0_4] : memref<8x128xi32, #tpu.memory_space<vmem>>, vector<8x128xi32>
    %8 = arith.select %3, %6, %7 : vector<8x128xi1>, vector<8x128xi32>
    %c0_5 = arith.constant 0 : index
    %c0_6 = arith.constant 0 : index
    %9 = vector.load %arg4[%c0_5, %c0_6] : memref<8x128xi32, #tpu.memory_space<vmem>>, vector<8x128xi32>
    tpu.vector_store %arg4[%c0_5, %c0_6], %8 {strides = array<i32>} : memref<8x128xi32, #tpu.memory_space<vmem>>, vector<8x128xi32>,
    return
  }
  func.func @transform_0(%arg0: i32) -> (i32, i32) {
    %c0_i32 = arith.constant 0 : i32
    %c0_i32_0 = arith.constant 0 : i32
    %c0_i32_1 = arith.constant 0 : i32
    return %c0_i32, %c0_i32_0 : i32, i32
  }
  func.func @transform_1(%arg0: i32) -> (i32, i32) {
    %c0_i32 = arith.constant 0 : i32
    %c0_i32_0 = arith.constant 0 : i32
    %c0_i32_1 = arith.constant 0 : i32
    return %c0_i32, %c0_i32_0 : i32, i32
  }
  func.func @transform_2(%arg0: i32) -> (i32, i32) {
    %c0_i32 = arith.constant 0 : i32
    %c0_i32_0 = arith.constant 0 : i32
    %c0_i32_1 = arith.constant 0 : i32
    return %c0_i32, %c0_i32_0 : i32, i32
  }
  func.func @transform_3(%arg0: i32) -> (i32, i32) {
    %c0_i32 = arith.constant 0 : i32
    %c0_i32_0 = arith.constant 0 : i32
    %c0_i32_1 = arith.constant 0 : i32
    return %c0_i32, %c0_i32_0 : i32, i32
  }
}

</mosaic_0001>

<llo_original>
// kernel: tpu_custom_call.1
$region0: #{tpu_custom_call.1}
  #allocation0 [shape = 'u32[]', space=smem, size = 0x4, offset = 0x4, fixed_abs, tag = 'smem constant byte address 0x4 - core index']
  #allocation1 [shape = 'u32[72,128]{1,0:T(1,128)}', space=vmem, size = 0x9000, scoped, tag = 'internal scratch']
  %s0 = inlined_call_operand.vmem [shape: s32[8,1], index: 0, kind: input, shape index: {}]
  %s1 = inlined_call_operand.vmem [shape: s32[8,1], index: 1, kind: input, shape index: {}]
  %s2 = inlined_call_operand.vmem [shape: s32[8,128], index: 2, kind: input, shape index: {}]
  %s3 = inlined_call_operand.hbm [shape: s32[8,128], index: 3, kind: output, shape index: {}]
  %s4 = sld [smem:[#allocation0]]
  $region22: #{tpu_custom_call.1} parent=0
    _
  %s6 = ssub.s32 1, %s4
  %s7 = scalar_select 0, %s6, %s4
  $region1: #{tpu_custom_call.1} parent=0
    #allocation2 [shape = 'u8[4096]{0}', space=vmem, size = 0x1000, scoped, tag = 'output window, operand 0, single buffered']
    #allocation3 [shape = 's32[1]{0}', space=sflag, size = 0x4, scoped, tag = 'scoped memory for tpu_custom_call.1']
    %8 = vsyncpa [#allocation3], 0
    // Predicated region
    $region2: #{tpu_custom_call.1} parent=1 // pred_check
      _
    $region3: #{tpu_custom_call.1} parent=1 // pred_check_branch
      %10 = sbr.rel (0) target = $region5
    $region4: #{tpu_custom_call.1} parent=1 // pred_region
      _
    $region5: #{tpu_custom_call.1} parent=1 // pred_fallthru
      _
    // Predicated region
    $region6: #{tpu_custom_call.1} parent=1 // pred_check
      _
    $region7: #{tpu_custom_call.1} parent=1 // pred_check_branch
      %12 = sbr.rel (0) target = $region9
    $region8: #{tpu_custom_call.1} parent=1 // pred_region
      _
    $region9: #{tpu_custom_call.1} parent=1 // pred_fallthru
      _
    // Predicated region
    $region10: #{tpu_custom_call.1} parent=1 // pred_check
      _
    $region11: #{tpu_custom_call.1} parent=1 // pred_check_branch
      %14 = sbr.rel (0) target = $region13
    $region12: #{tpu_custom_call.1} parent=1 // pred_region
      _
    $region13: #{tpu_custom_call.1} parent=1 // pred_fallthru
      _
    %v15 = vlaneseq
    %v16 = vand.u32 %v15, 127
    %v17 = vld [vmem:[%s0] sm:$0xff]
    %18 = vset.pattern.permute.xlu0 0
    %19 = vperm.xlu0 %18, %v17
    %v20 = vpop.permute.xlu0 %19
    %vm21 = vcmp.ne.s32.totalorder %v16, %v20
    %v22 = vld [vmem:[%s1] sm:$0xff]
    %23 = vset.pattern.permute.xlu0 0
    %24 = vperm.xlu0 %23, %v22
    %v25 = vpop.permute.xlu0 %24
    %v26 = vld [vmem:[%s2] sm:$0xff]
    %v27 = vsel %vm21, %v25, %v26
    %28 = vst [vmem:[#allocation2] sm:$0xff] %v27
    // Predicated region
    $region14: #{tpu_custom_call.1} parent=1 // pred_check
      _
    $region15: #{tpu_custom_call.1} parent=1 // pred_check_branch
      %30 = sbr.rel (0) target = $region17
    $region16: #{tpu_custom_call.1} parent=1 // pred_region
      %32 = vsyncadd [#allocation3], 0
      %s34 = sshll.u32 [#allocation2], 4
      %s35 = int_to_ptr.vmem [resolvable:$true] %s34
      %s36 = sshll.u32 %s3, 4
      %s37 = int_to_ptr.hbm [resolvable:$true] %s36
      %39 = dma.vmem_to_hbm [thread:$0]  %s35, 128, %s37, [#allocation3]
    $region17: #{tpu_custom_call.1} parent=1 // pred_fallthru
      _
    // Predicated region
    $region18: #{tpu_custom_call.1} parent=1 // pred_check
      _
    $region19: #{tpu_custom_call.1} parent=1 // pred_check_branch
      %41 = sbr.rel (0) target = $region21
    $region20: #{tpu_custom_call.1} parent=1 // pred_region
      %43 = dma.done [#allocation3], 128
    $region21: #{tpu_custom_call.1} parent=1 // pred_fallthru
      _
    %44 = vsyncpa [#allocation3], 1

</llo_original>
